<compile_context>
chip_gen: v5e
topology: v5e:2x2
jax: 0.10.0
libtpu: 0.0.40
codegen_flags: <defaults>
</compile_context>

<pallas_src>
import functools

import jax
import jax.numpy as jnp
from jax import lax
from jax.experimental import pallas as pl
from jax.experimental.pallas import tpu as pltpu

EPS = 1e-5  # PyTorch GroupNorm default eps


def _vmem_limit_bytes():
    """Per-generation VMEM budget: ~100 MiB on 128-MiB parts (v5e/v6e), ~48 MiB on 64-MiB v7x."""
    cap = 64 << 20
    try:
        info = pltpu.get_tpu_info()
        cap = int(getattr(info, "vmem_capacity_bytes", cap))
    except Exception:
        pass
    if cap >= (128 << 20):
        return 100 << 20
    return min(48 << 20, max(cap - (16 << 20), 16 << 20))


# --------------------------------------------------------------------------------------
# Kernel 1: GroupNorm statistics (per-sublane partial sums, reduced over S tiles)
# --------------------------------------------------------------------------------------
def gn_stats_kernel(x_ref, sum_ref, sumsq_ref, acc1_ref, acc2_ref, *, rows):
    si = pl.program_id(1)

    @pl.when(si == 0)
    def _():
        acc1_ref[...] = jnp.zeros_like(acc1_ref)
        acc2_ref[...] = jnp.zeros_like(acc2_ref)

    x = x_ref[...]                                    # (TS, C) f32
    ts, c = x.shape
    # Sublane-preserving split (ts, C) -> (ts/rows, rows, C); summing over the leading axis is
    # pure per-vreg VPU adds, so this streaming pass stays at the HBM roofline.  The final
    # cross-sublane reduction to one row per channel happens once, in the wrapper finalize.
    xr = x.reshape(ts // rows, rows, c)
    acc1_ref[...] += jnp.sum(xr, axis=0)              # (rows, C)
    acc2_ref[...] += jnp.sum(xr * xr, axis=0)

    @pl.when(si == pl.num_programs(1) - 1)
    def _():
        sum_ref[...] = acc1_ref[...]
        sumsq_ref[...] = acc2_ref[...]


# --------------------------------------------------------------------------------------
# Kernel 2: GroupNorm apply (folded scale/shift) + fused 1x1-conv QKV projection
# --------------------------------------------------------------------------------------
def qkv_kernel(x_ref, scale_ref, shift_ref, wqkv_ref, bqkv_ref, q_ref, k_ref, v_ref):
    c = q_ref.shape[-1]
    # Normalization stays in f32 (v5e VPU has no bf16 path); only MXU operands are bf16.
    xn = x_ref[...] * scale_ref[...] + shift_ref[...]            # (TS, C) f32
    y = jnp.dot(xn.astype(jnp.bfloat16), wqkv_ref[...],
                preferred_element_type=jnp.float32) + bqkv_ref[...]   # (TS, 3C) f32
    # The softmax scale C**-0.5 is pre-folded into the wq / bq columns in the wrapper.
    q_ref[...] = y[:, :c].astype(jnp.bfloat16)
    k_ref[...] = y[:, c:2 * c].astype(jnp.bfloat16)
    v_ref[...] = y[:, 2 * c:].astype(jnp.bfloat16)


# --------------------------------------------------------------------------------------
# Kernel 3: flash-style attention (online softmax over kv tiles) + out-proj + residual
# --------------------------------------------------------------------------------------
def flash_attn_kernel(q_ref, k_ref, v_ref, xres_ref, wout_ref, bout_ref,
                      y_ref, m_ref, l_ref, acc_ref):
    ki = pl.program_id(2)

    @pl.when(ki == 0)
    def _():
        m_ref[...] = jnp.full_like(m_ref, -jnp.inf)
        l_ref[...] = jnp.zeros_like(l_ref)
        acc_ref[...] = jnp.zeros_like(acc_ref)

    q = q_ref[...]                                    # (TQ, C) bf16 (already scaled)
    k = k_ref[...]                                    # (TK, C) bf16
    # Contract the channel dims directly -> no k.T materialization; scale already folded.
    s = lax.dot_general(q, k, (((1,), (1,)), ((), ())),
                        preferred_element_type=jnp.float32)       # (TQ, TK) f32

    m_prev = m_ref[...]
    m_new = jnp.maximum(m_prev, jnp.max(s, axis=-1, keepdims=True))
    alpha = jnp.exp(m_prev - m_new)
    p = jnp.exp(s - m_new)                            # (TQ, TK) f32
    l_ref[...] = alpha * l_ref[...] + jnp.sum(p, axis=-1, keepdims=True)
    acc_ref[...] = alpha * acc_ref[...] + jnp.dot(
        p.astype(jnp.bfloat16), v_ref[...], preferred_element_type=jnp.float32)
    m_ref[...] = m_new

    @pl.when(ki == pl.num_programs(2) - 1)
    def _():
        # Exact division: runs once per q tile, so it is essentially free and tightens accuracy
        # versus the previous approx reciprocal.
        o = acc_ref[...] / l_ref[...]                              # (TQ, C) f32
        y = jnp.dot(o.astype(jnp.bfloat16), wout_ref[...],
                    preferred_element_type=jnp.float32)
        y_ref[...] = y + bout_ref[...] + xres_ref[...]


# --------------------------------------------------------------------------------------
# Tile selection helpers
# --------------------------------------------------------------------------------------
def _pick_tile(S, target):
    """Largest divisor of S <= target, preferring 256-/128-/16-/8-aligned sizes (MXU / bf16
    packing friendly).  Falls back to the full extent if no aligned divisor exists.
    # TODO(synk): for large awkwardly-sized S, pad S to an aligned size and mask padded kv
    # columns instead of falling back to the full extent."""
    if S <= target:
        return S
    for align in (256, 128, 16, 8):
        t = (target // align) * align
        while t >= align:
            if S % t == 0:
                return t
            t -= align
    return S


def _flash_vmem_bytes(tq, tk, C, kv_bufs=2):
    """Conservative VMEM estimate for the flash kernel (double-buffered blocks + transients)."""
    b = 2 * tk * C * 2 * kv_bufs            # k, v blocks (bf16)
    b += tq * C * 2 * 2                     # q (bf16)
    b += tq * C * 4 * 2                     # residual x (f32)
    b += C * C * 2 * 2 + C * 4 * 2          # W_out (bf16), b_out
    b += tq * C * 4 * 2                     # y output (f32)
    b += tq * C * 4 + 2 * tq * 4            # acc / m / l scratch
    b += 3 * tq * tk * 4                    # s / p transients (headroom)
    return b


def _qkv_vmem_bytes(ts, C):
    return (ts * C * 4 * 2                  # x (f32)
            + C * 3 * C * 2 * 2             # wqkv (bf16)
            + 3 * ts * C * 2 * 2            # q, k, v outputs (bf16)
            + ts * 3 * C * 4                # (ts, 3C) f32 intermediate
            + ts * 3 * C * 2                # bf16 staging
            + 2 * 3 * C * 4)


# --------------------------------------------------------------------------------------
# Wrapper
# --------------------------------------------------------------------------------------
def attention_block(x_nchw, params, num_groups, *,
                    block_q=512, block_kv=512, block_s=512, kv_resident=None):
    """x_nchw: (B, C, H, W) float32. Returns (B, C, H, W) float32.
    kv_resident: None=auto (fit VMEM budget), True=force resident K/V, False=force streamed."""
    B, C, H, W = x_nchw.shape
    S = H * W
    Cg = C // num_groups
    gamma, beta, wqkv, bqkv, wout, bout = params

    vmem_limit = _vmem_limit_bytes()
    budget = int(0.9 * vmem_limit)

    # NCHW -> (B, S, C).  (Layout-change fusion into the kernels is a known follow-up.)
    x = jnp.transpose(x_nchw, (0, 2, 3, 1)).reshape(B, S, C).astype(jnp.float32)

    # ---- tile selection ----------------------------------------------------------------
    ts = _pick_tile(S, block_s)
    while _qkv_vmem_bytes(ts, C) > budget and ts > 8:
        nt = _pick_tile(S, max(ts // 2, 8))
        if nt >= ts:
            break
        ts = nt

    # Flash tiling: prefer VMEM-resident K/V (tk = S).  In the kv loop only k/v tiles are
    # re-fetched, so streamed arithmetic intensity == tq; residency removes the n_q-fold
    # K/V HBM re-read entirely (dominant win on v6e/v7x).
    tq_candidates = sorted({_pick_tile(S, max(block_q, 256)),
                            _pick_tile(S, 256), _pick_tile(S, 128)}, reverse=True)
    tq, tk, resident = None, None, False
    if kv_resident is not False:
        for cand in tq_candidates:
            if kv_resident is True or _flash_vmem_bytes(cand, S, C) <= budget:
                tq, tk, resident = cand, S, True
                break
    if not resident:
        tq = _pick_tile(S, block_q)
        tk = _pick_tile(S, block_kv)
        while _flash_vmem_bytes(tq, tk, C) > budget and tq > 8:
            nt = _pick_tile(S, max(tq // 2, 8))
            if nt >= tq:
                break
            tq = nt

    # ---- 1) GroupNorm statistics (tiled reduction over S) -------------------------------
    rows = 8 if ts % 8 == 0 else 1
    sums, sumsqs = pl.pallas_call(
        functools.partial(gn_stats_kernel, rows=rows),
        out_shape=(jax.ShapeDtypeStruct((B, rows, C), jnp.float32),
                   jax.ShapeDtypeStruct((B, rows, C), jnp.float32)),
        grid_spec=pltpu.PrefetchScalarGridSpec(
            num_scalar_prefetch=0,
            grid=(B, S // ts),
            in_specs=[pl.BlockSpec((None, ts, C), lambda b, si: (b, si, 0))],
            out_specs=(pl.BlockSpec((None, rows, C), lambda b, si: (b, 0, 0)),
                       pl.BlockSpec((None, rows, C), lambda b, si: (b, 0, 0))),
            scratch_shapes=[pltpu.VMEM((rows, C), jnp.float32),
                            pltpu.VMEM((rows, C), jnp.float32)]),
        compiler_params=pltpu.CompilerParams(
            dimension_semantics=("parallel", "arbitrary"),
            vmem_limit_bytes=vmem_limit),
    )(x)

    # Tiny O(B*C) finalize outside the grid: per-group mean/var, then fold the GroupNorm affine
    # into a single per-channel scale/shift so the per-tile kernel does one fused multiply-add.
    n = S * Cg
    g_sum = sums.sum(axis=1).reshape(B, num_groups, Cg).sum(-1)       # (B, G)
    g_sumsq = sumsqs.sum(axis=1).reshape(B, num_groups, Cg).sum(-1)
    mean_g = g_sum / n
    # E[x^2] - mean^2 in f32; clamp to avoid a negative variance under cancellation.
    var_g = jnp.maximum(g_sumsq / n - mean_g * mean_g, 0.0)
    rstd_g = lax.rsqrt(var_g + EPS)
    mean_c = jnp.repeat(mean_g, Cg, axis=-1)                          # (B, C)
    rstd_c = jnp.repeat(rstd_g, Cg, axis=-1)
    gamma_c = gamma.reshape(1, C)
    beta_c = beta.reshape(1, C)
    scale_c = (gamma_c * rstd_c).reshape(B, 1, C).astype(jnp.float32)
    shift_c = (beta_c - mean_c * gamma_c * rstd_c).reshape(B, 1, C).astype(jnp.float32)

    # Fold the softmax scale C**-0.5 into the wq / bq columns; stage weights in bf16 for MXU.
    sm_scale = C ** (-0.5)
    col_scale = jnp.concatenate([jnp.full((1, C), sm_scale, jnp.float32),
                                 jnp.ones((1, 2 * C), jnp.float32)], axis=1)
    wqkv_b = (wqkv.astype(jnp.float32) * col_scale).astype(jnp.bfloat16)    # (C, 3C)
    bqkv_f = (bqkv.astype(jnp.float32) * col_scale).astype(jnp.float32)     # (1, 3C)
    wout_b = wout.astype(jnp.bfloat16)
    bout_f = bout.astype(jnp.float32)

    # ---- 2) GroupNorm apply + fused QKV projection (tiled over S, fully parallel) --------
    x_spec = pl.BlockSpec((None, ts, C), lambda b, si: (b, si, 0))
    sc_spec = pl.BlockSpec((None, 1, C), lambda b, si: (b, 0, 0))
    q, k, v = pl.pallas_call(
        qkv_kernel,
        out_shape=(jax.ShapeDtypeStruct((B, S, C), jnp.bfloat16),) * 3,
        grid_spec=pltpu.PrefetchScalarGridSpec(
            num_scalar_prefetch=0,
            grid=(B, S // ts),
            in_specs=[x_spec, sc_spec, sc_spec,
                      pl.BlockSpec((C, 3 * C), lambda b, si: (0, 0)),
                      pl.BlockSpec((1, 3 * C), lambda b, si: (0, 0))],
            out_specs=(x_spec, x_spec, x_spec)),
        compiler_params=pltpu.CompilerParams(
            dimension_semantics=("parallel", "parallel"),
            vmem_limit_bytes=vmem_limit),
    )(x, scale_c, shift_c, wqkv_b, bqkv_f)

    # ---- 3) flash attention + output projection + residual -------------------------------
    n_q, n_kv = S // tq, S // tk
    kv_passes = 1 if resident else n_q   # how many times k/v stream from HBM per batch
    cost = pl.CostEstimate(
        flops=int(4 * B * S * S * C + 2 * B * S * C * C),
        transcendentals=int(B * S * S),
        bytes_accessed=int(B * S * C * 2                       # q
                           + 2 * B * S * C * 2 * kv_passes     # k, v (re-read when streamed)
                           + B * S * C * 4                     # residual x
                           + B * S * C * 4                     # y
                           + C * C * 2 + 4 * C))
    y = pl.pallas_call(
        flash_attn_kernel,
        out_shape=jax.ShapeDtypeStruct((B, S, C), jnp.float32),
        grid_spec=pltpu.PrefetchScalarGridSpec(
            num_scalar_prefetch=0,
            grid=(B, n_q, n_kv),
            in_specs=[
                pl.BlockSpec((None, tq, C), lambda b, qi, ki: (b, qi, 0)),   # q
                pl.BlockSpec((None, tk, C), lambda b, qi, ki: (b, ki, 0)),   # k (resident: ki==0)
                pl.BlockSpec((None, tk, C), lambda b, qi, ki: (b, ki, 0)),   # v
                pl.BlockSpec((None, tq, C), lambda b, qi, ki: (b, qi, 0)),   # residual x
                pl.BlockSpec((C, C), lambda b, qi, ki: (0, 0)),              # W_out (bf16)
                pl.BlockSpec((1, C), lambda b, qi, ki: (0, 0)),              # b_out
            ],
            out_specs=pl.BlockSpec((None, tq, C), lambda b, qi, ki: (b, qi, 0)),
            scratch_shapes=[pltpu.VMEM((tq, 1), jnp.float32),    # running max m
                            pltpu.VMEM((tq, 1), jnp.float32),    # running denom l
                            pltpu.VMEM((tq, C), jnp.float32)]),  # output accumulator
        compiler_params=pltpu.CompilerParams(
            dimension_semantics=("parallel", "parallel", "arbitrary"),
            vmem_limit_bytes=vmem_limit),
        cost_estimate=cost,
    )(q, k, v, x, wout_b, bout_f)

    # (B, S, C) -> NCHW
    return jnp.transpose(y.reshape(B, H, W, C), (0, 3, 1, 2))


# --------------------------------------------------------------------------------------
# Pure-JAX reference mirroring the PyTorch forward exactly (f32)
# --------------------------------------------------------------------------------------
def reference(x_nchw, params, num_groups):
    B, C, H, W = x_nchw.shape
    gamma, beta, wqkv, bqkv, wout, bout = params
    xg = x_nchw.reshape(B, num_groups, C // num_groups, H, W)
    mean = xg.mean(axis=(2, 3, 4), keepdims=True)
    var = ((xg - mean) ** 2).mean(axis=(2, 3, 4), keepdims=True)
    xn = ((xg - mean) / jnp.sqrt(var + EPS)).reshape(B, C, H, W)
    xn = xn * gamma.reshape(1, C, 1, 1) + beta.reshape(1, C, 1, 1)
    xf = jnp.transpose(xn, (0, 2, 3, 1)).reshape(B, H * W, C)
    qkv = xf @ wqkv + bqkv
    q, k, v = qkv[..., :C], qkv[..., C:2 * C], qkv[..., 2 * C:]
    d = jnp.einsum('bsc,btc->bst', q, k) * C ** (-0.5)
    a = jax.nn.softmax(d, axis=-1)
    o = jnp.einsum('bst,btc->bsc', a, v)
    y = o @ wout + bout
    return jnp.transpose(y.reshape(B, H, W, C), (0, 3, 1, 2)) + x_nchw


if __name__ == "__main__":
    B, C, H, W = 2, 8, 4, 4
    num_groups = 4  # must divide C; stands in for the default 32 at this small size

    key = jax.random.PRNGKey(0)
    k_x, k_wqkv, k_bqkv, k_wout, k_bout = jax.random.split(key, 5)

    x = jax.random.normal(k_x, (B, C, H, W), dtype=jnp.float32)

    # Deterministic synthetic parameters (GroupNorm affine defaults: gamma=1, beta=0).
    gamma = jnp.ones((1, C), dtype=jnp.float32)
    beta = jnp.zeros((1, C), dtype=jnp.float32)
    wqkv = 0.05 * jax.random.normal(k_wqkv, (C, 3 * C), dtype=jnp.float32)
    bqkv = 0.01 * jax.random.normal(k_bqkv, (1, 3 * C), dtype=jnp.float32)
    wout = 0.05 * jax.random.normal(k_wout, (C, C), dtype=jnp.float32)
    bout = 0.01 * jax.random.normal(k_bout, (1, C), dtype=jnp.float32)
    params = (gamma, beta, wqkv, bqkv, wout, bout)

    ref = jax.block_until_ready(reference(x, params, num_groups))

    # Path 1: default (auto) tiling -> VMEM-resident K/V (tk = S), single kv step.
    out_res = jax.block_until_ready(
        attention_block(x, params, num_groups, block_s=8))
    # Path 2: forced streamed K/V with small tiles so the online-softmax accumulation loop
    # (multiple q and kv tiles) is actually exercised at S = 16.
    out_str = jax.block_until_ready(
        attention_block(x, params, num_groups,
                        block_q=8, block_kv=8, block_s=8, kv_resident=False))

    assert out_res.shape == (B, C, H, W)
    assert out_str.shape == (B, C, H, W)
    # bf16 MXU staging limits precision; exact reciprocal in finalize keeps error ~1e-3.
    assert jnp.allclose(out_res, ref, atol=1e-2, rtol=1e-2), "resident path mismatch vs reference"
    assert jnp.allclose(out_str, ref, atol=1e-2, rtol=1e-2), "streamed path mismatch vs reference"

    print("KERNEL_OK")
</pallas_src>

<mosaic_0001>
module attributes {stable_mosaic.version = 11 : i64} {
  func.func @gn_stats_kernel(%arg0: i32, %arg1: i32, %arg2: memref<1x8x8xf32, #tpu.memory_space<vmem>>, %arg3: memref<1x8x8xf32, #tpu.memory_space<vmem>>, %arg4: memref<1x8x8xf32, #tpu.memory_space<vmem>>, %arg5: memref<8x8xf32, #tpu.memory_space<vmem>>, %arg6: memref<8x8xf32, #tpu.memory_space<vmem>>) attributes {dimension_semantics = [#tpu.dimension_semantics<parallel>, #tpu.dimension_semantics<arbitrary>], iteration_bounds = array<i64: 2, 2>, scalar_prefetch = 0 : i64, scratch_operands = 2 : i64, tpu.core_type = #tpu.core_type<tc>, window_params = [{transform_indices = @transform_0, window_bounds = array<i64: 1, 8, 8>}, {transform_indices = @transform_1, window_bounds = array<i64: 1, 8, 8>}, {transform_indices = @transform_2, window_bounds = array<i64: 1, 8, 8>}]} {
    %c0_i32 = arith.constant 0 : i32
    %0 = arith.cmpi eq, %arg1, %c0_i32 : i32
    %1 = arith.extui %0 : i1 to i32
    %c0_i32_0 = arith.constant 0 : i32
    %2 = arith.cmpi ne, %1, %c0_i32_0 : i32
    scf.if %2 {
      %cst_13 = arith.constant 0.000000e+00 : f32
      %18 = vector.broadcast %cst_13 : f32 to vector<8x8xf32>
      %c0_14 = arith.constant 0 : index
      %c0_15 = arith.constant 0 : index
      %19 = vector.load %arg5[%c0_14, %c0_15] : memref<8x8xf32, #tpu.memory_space<vmem>>, vector<8x8xf32>
      tpu.vector_store %arg5[%c0_14, %c0_15], %18 {strides = array<i32>} : memref<8x8xf32, #tpu.memory_space<vmem>>, vector<8x8xf32>,
      %cst_16 = arith.constant 0.000000e+00 : f32
      %20 = vector.broadcast %cst_16 : f32 to vector<8x8xf32>
      %c0_17 = arith.constant 0 : index
      %c0_18 = arith.constant 0 : index
      %21 = vector.load %arg6[%c0_17, %c0_18] : memref<8x8xf32, #tpu.memory_space<vmem>>, vector<8x8xf32>
      tpu.vector_store %arg6[%c0_17, %c0_18], %20 {strides = array<i32>} : memref<8x8xf32, #tpu.memory_space<vmem>>, vector<8x8xf32>,
    } else {
    }
    %c0 = arith.constant 0 : index
    %c0_1 = arith.constant 0 : index
    %c0_2 = arith.constant 0 : index
    %3 = vector.load %arg2[%c0, %c0_1, %c0_2] : memref<1x8x8xf32, #tpu.memory_space<vmem>>, vector<1x8x8xf32>
    %4 = vector.shape_cast %3 : vector<1x8x8xf32> to vector<8x8xf32>
    %5 = vector.shape_cast %4 : vector<8x8xf32> to vector<1x8x8xf32>
    %c0_3 = arith.constant 0 : index
    %c0_4 = arith.constant 0 : index
    %6 = vector.load %arg5[%c0_3, %c0_4] : memref<8x8xf32, #tpu.memory_space<vmem>>, vector<8x8xf32>
    %cst = arith.constant dense<0.000000e+00> : vector<8x8xf32>
    %7 = vector.multi_reduction <add>, %5, %cst [0] : vector<1x8x8xf32> to vector<8x8xf32>
    %8 = arith.addf %6, %7 : vector<8x8xf32>
    %c0_5 = arith.constant 0 : index
    %c0_6 = arith.constant 0 : index
    %9 = vector.load %arg5[%c0_5, %c0_6] : memref<8x8xf32, #tpu.memory_space<vmem>>, vector<8x8xf32>
    tpu.vector_store %arg5[%c0_5, %c0_6], %8 {strides = array<i32>} : memref<8x8xf32, #tpu.memory_space<vmem>>, vector<8x8xf32>,
    %c0_7 = arith.constant 0 : index
    %c0_8 = arith.constant 0 : index
    %10 = vector.load %arg6[%c0_7, %c0_8] : memref<8x8xf32, #tpu.memory_space<vmem>>, vector<8x8xf32>
    %11 = arith.mulf %5, %5 : vector<1x8x8xf32>
    %cst_9 = arith.constant dense<0.000000e+00> : vector<8x8xf32>
    %12 = vector.multi_reduction <add>, %11, %cst_9 [0] : vector<1x8x8xf32> to vector<8x8xf32>
    %13 = arith.addf %10, %12 : vector<8x8xf32>
    %c0_10 = arith.constant 0 : index
    %c0_11 = arith.constant 0 : index
    %14 = vector.load %arg6[%c0_10, %c0_11] : memref<8x8xf32, #tpu.memory_space<vmem>>, vector<8x8xf32>
    tpu.vector_store %arg6[%c0_10, %c0_11], %13 {strides = array<i32>} : memref<8x8xf32, #tpu.memory_space<vmem>>, vector<8x8xf32>,
    %c1_i32 = arith.constant 1 : i32
    %15 = arith.cmpi eq, %arg1, %c1_i32 : i32
    %16 = arith.extui %15 : i1 to i32
    %c0_i32_12 = arith.constant 0 : i32
    %17 = arith.cmpi ne, %16, %c0_i32_12 : i32
    scf.if %17 {
      %c0_13 = arith.constant 0 : index
      %c0_14 = arith.constant 0 : index
      %18 = vector.load %arg5[%c0_13, %c0_14] : memref<8x8xf32, #tpu.memory_space<vmem>>, vector<8x8xf32>
      %c0_15 = arith.constant 0 : index
      %c0_16 = arith.constant 0 : index
      %c0_17 = arith.constant 0 : index
      %19 = vector.load %arg3[%c0_15, %c0_16, %c0_17] : memref<1x8x8xf32, #tpu.memory_space<vmem>>, vector<1x8x8xf32>
      %20 = vector.shape_cast %19 : vector<1x8x8xf32> to vector<8x8xf32>
      %21 = vector.shape_cast %18 : vector<8x8xf32> to vector<1x8x8xf32>
      tpu.vector_store %arg3[%c0_15, %c0_16, %c0_17], %21 {strides = array<i32>} : memref<1x8x8xf32, #tpu.memory_space<vmem>>, vector<1x8x8xf32>,
      %c0_18 = arith.constant 0 : index
      %c0_19 = arith.constant 0 : index
      %22 = vector.load %arg6[%c0_18, %c0_19] : memref<8x8xf32, #tpu.memory_space<vmem>>, vector<8x8xf32>
      %c0_20 = arith.constant 0 : index
      %c0_21 = arith.constant 0 : index
      %c0_22 = arith.constant 0 : index
      %23 = vector.load %arg4[%c0_20, %c0_21, %c0_22] : memref<1x8x8xf32, #tpu.memory_space<vmem>>, vector<1x8x8xf32>
      %24 = vector.shape_cast %23 : vector<1x8x8xf32> to vector<8x8xf32>
      %25 = vector.shape_cast %22 : vector<8x8xf32> to vector<1x8x8xf32>
      tpu.vector_store %arg4[%c0_20, %c0_21, %c0_22], %25 {strides = array<i32>} : memref<1x8x8xf32, #tpu.memory_space<vmem>>, vector<1x8x8xf32>,
    } else {
    }
    return
  }
  func.func @transform_0(%arg0: i32, %arg1: i32) -> (i32, i32, i32) {
    %c0_i32 = arith.constant 0 : i32
    %c0_i32_0 = arith.constant 0 : i32
    return %arg0, %arg1, %c0_i32 : i32, i32, i32
  }
  func.func @transform_1(%arg0: i32, %arg1: i32) -> (i32, i32, i32) {
    %c0_i32 = arith.constant 0 : i32
    %c0_i32_0 = arith.constant 0 : i32
    %c0_i32_1 = arith.constant 0 : i32
    return %arg0, %c0_i32, %c0_i32_0 : i32, i32, i32
  }
  func.func @transform_2(%arg0: i32, %arg1: i32) -> (i32, i32, i32) {
    %c0_i32 = arith.constant 0 : i32
    %c0_i32_0 = arith.constant 0 : i32
    %c0_i32_1 = arith.constant 0 : i32
    return %arg0, %c0_i32, %c0_i32_0 : i32, i32, i32
  }
}

</mosaic_0001>

<llo_original>
// kernel: tpu_custom_call.1
$region0: #{tpu_custom_call.1}
  #allocation0 [shape = 'u32[]', space=smem, size = 0x4, offset = 0x4, fixed_abs, tag = 'smem constant byte address 0x4 - core index']
  #allocation1 [shape = 'u32[72,128]{1,0:T(1,128)}', space=vmem, size = 0x9000, scoped, tag = 'internal scratch']
  #allocation2 [shape = 'f32[8,8]{1,0:T(8,128)}', space=vmem, size = 0x1000, scoped, tag = 'scratch operand']
  #allocation3 [shape = 'f32[8,8]{1,0:T(8,128)}', space=vmem, size = 0x1000, scoped, tag = 'scratch operand']
  %s0 = inlined_call_operand.vmem [shape: f32[2,16,8], index: 0, kind: input, shape index: {}]
  %s1 = inlined_call_operand.hbm [shape: f32[2,8,8], index: 1, kind: output, shape index: {0}]
  %s2 = inlined_call_operand.hbm [shape: f32[2,8,8], index: 2, kind: output, shape index: {1}]
  %3 = xla_tuple %s1, %s2
  %s4 = sld [smem:[#allocation0]]
  $region53: #{tpu_custom_call.1} parent=0
    _
  %s6 = ssub.s32 1, %s4
  %s7 = scalar_select 0, %s6, %s4
  $region1: #{tpu_custom_call.1} parent=0
    #allocation4 [shape = 'u8[8192]{0}', space=vmem, size = 0x2000, scoped, tag = 'output window, operand 0']
    #allocation5 [shape = 's32[2]{0}', space=sflag, size = 0x8, scoped, tag = 'scoped memory for tpu_custom_call.1']
    #allocation6 [shape = 'u8[8192]{0}', space=vmem, size = 0x2000, scoped, tag = 'output window, operand 1']
    #allocation7 [shape = 's32[2]{0}', space=sflag, size = 0x8, scoped, tag = 'scoped memory for tpu_custom_call.1']
    %8 = vsyncpa [#allocation5], 0
    %s9 = scalar_lea.sflag [#allocation5], 1
    %10 = vsyncpa %s9, 0
    %11 = vsyncpa [#allocation7], 0
    %s12 = scalar_lea.sflag [#allocation7], 1
    %13 = vsyncpa %s12, 0
    loop: start=0, step=1, limit=6
    $region2: #{tpu_custom_call.1} parent=1 // loop_pre_header
      _
    $region3: #{tpu_custom_call.1} parent=1 // loop_header
      %s15 = sphi 0, %s19
      %p16 = scmp.ge.s32.totalorder %s15, 6
      %s22 = sphi 0, %s34
      %s23 = sphi 0, %s30
      %s24 = sphi 0, %s22
      %s25 = sphi 0, %s23
      %s26 = sphi 0, %s24
      %s27 = sphi 0, %s25
      %s39 = sphi 0, %s41
      %s42 = sphi 0, %s39
      %s43 = sphi 0, %s42
      %s59 = sphi 0, %s43
      %s65 = sphi 0, %s67
      %s68 = sphi 0, %s65
      %s69 = sphi 0, %s68
      %s85 = sphi 0, %s69
      %s91 = sphi 0, %s93
      %s94 = sphi 0, %s91
      %s95 = sphi 0, %s94
      %s111 = sphi 0, %s95
    $region4: #{tpu_custom_call.1} parent=1 // loop_header_branch
      %18 = sbr.rel (%p16) target = $region8
    $region5: #{tpu_custom_call.1} parent=1 // loop_body
      %s20 = ssub.s32 %s15, 1
      %s21 = ssub.s32 %s15, 2
      %s28 = sadd.s32 1, %s23
      %p29 = scmp.ge.s32.totalorder %s28, 2
      %s30 = scalar_select %p29, 0, %s28
      %s31 = sadd.s32 1, %s22
      %s32 = scalar_select %p29, %s31, %s22
      %p33 = scmp.ge.s32.totalorder %s32, 2
      %s34 = scalar_select %p33, 0, %s32
      %s35 = ssub.s32 %s22, %s34
      %s36 = ssub.s32 %s23, %s30
      %s37 = sor.u32 %s35, %s36
      %p38 = scmp.eq.s32.totalorder %s37, 0
      %s40 = sadd.s32 %s39, 1
      %s41 = scalar_select %p38, %s39, %s40
      %p44 = pneg %p38
      %p45 = scmp.eq.s32.totalorder %s15, 3
      %p46 = por %p44, %p45
      %p47 = scmp.ne.s32.totalorder %s39, %s42
      %p48 = scmp.eq.s32.totalorder %s15, 0
      %p49 = por %p47, %p48
      %p50 = scmp.ne.s32.totalorder %s39, %s42
      %p51 = scmp.eq.s32.totalorder %s20, 3
      %p52 = por %p50, %p51
      %p53 = scmp.ne.s32.totalorder %s42, %s43
      %p54 = scmp.eq.s32.totalorder %s20, 0
      %p55 = por %p53, %p54
      %p56 = scmp.ne.s32.totalorder %s42, %s43
      %p57 = scmp.eq.s32.totalorder %s21, 3
      %p58 = por %p56, %p57
      %p60 = scmp.ne.s32.totalorder %s43, %s59
      %p61 = scmp.eq.s32.totalorder %s21, 0
      %p62 = por %p60, %p61
      %s63 = ssub.s32 %s22, %s34
      %p64 = scmp.eq.s32.totalorder %s63, 0
      %s66 = sadd.s32 %s65, 1
      %s67 = scalar_select %p64, %s65, %s66
      %p70 = pneg %p64
      %p71 = scmp.eq.s32.totalorder %s15, 3
      %p72 = por %p70, %p71
      %p73 = scmp.ne.s32.totalorder %s65, %s68
      %p74 = scmp.eq.s32.totalorder %s15, 0
      %p75 = por %p73, %p74
      %p76 = scmp.ne.s32.totalorder %s65, %s68
      %p77 = scmp.eq.s32.totalorder %s20, 3
      %p78 = por %p76, %p77
      %p79 = scmp.ne.s32.totalorder %s68, %s69
      %p80 = scmp.eq.s32.totalorder %s20, 0
      %p81 = por %p79, %p80
      %p82 = scmp.ne.s32.totalorder %s68, %s69
      %p83 = scmp.eq.s32.totalorder %s21, 3
      %p84 = por %p82, %p83
      %p86 = scmp.ne.s32.totalorder %s69, %s85
      %p87 = scmp.eq.s32.totalorder %s21, 0
      %p88 = por %p86, %p87
      %s89 = ssub.s32 %s22, %s34
      %p90 = scmp.eq.s32.totalorder %s89, 0
      %s92 = sadd.s32 %s91, 1
      %s93 = scalar_select %p90, %s91, %s92
      %p96 = pneg %p90
      %p97 = scmp.eq.s32.totalorder %s15, 3
      %p98 = por %p96, %p97
      %p99 = scmp.ne.s32.totalorder %s91, %s94
      %p100 = scmp.eq.s32.totalorder %s15, 0
      %p101 = por %p99, %p100
      %p102 = scmp.ne.s32.totalorder %s91, %s94
      %p103 = scmp.eq.s32.totalorder %s20, 3
      %p104 = por %p102, %p103
      %p105 = scmp.ne.s32.totalorder %s94, %s95
      %p106 = scmp.eq.s32.totalorder %s20, 0
      %p107 = por %p105, %p106
      %p108 = scmp.ne.s32.totalorder %s94, %s95
      %p109 = scmp.eq.s32.totalorder %s21, 3
      %p110 = por %p108, %p109
      %p112 = scmp.ne.s32.totalorder %s95, %s111
      %p113 = scmp.eq.s32.totalorder %s21, 0
      %p114 = por %p112, %p113
      %p115 = scmp.le.s32.totalorder 1, %s15
      %p116 = scmp.lt.s32.totalorder %s15, 5
      %p117 = pnand %p115, %p116
      %p118 = pneg %p117
      // Predicated region
      $region9: #{tpu_custom_call.1} parent=5 // pred_check
        _
      $region10: #{tpu_custom_call.1} parent=5 // pred_check_branch
        %120 = sbr.rel (%p117) target = $region12
      $region11: #{tpu_custom_call.1} parent=5 // pred_region
        %s121 = ssub.s32 %s15, 1
      $region12: #{tpu_custom_call.1} parent=5 // pred_fallthru
        _
      %p122 = scmp.lt.s32.totalorder %s15, 4
      // Predicated region
      $region13: #{tpu_custom_call.1} parent=5 // pred_check
        %p123 = pneg %p122
      $region14: #{tpu_custom_call.1} parent=5 // pred_check_branch
        %125 = sbr.rel (%p123) target = $region16
      $region15: #{tpu_custom_call.1} parent=5 // pred_region
        // Predicated region
        $region17: #{tpu_custom_call.1} parent=15 // pred_check
          %p126 = pneg %p49
        $region18: #{tpu_custom_call.1} parent=15 // pred_check_branch
          %128 = sbr.rel (%p126) target = $region20
        $region19: #{tpu_custom_call.1} parent=15 // pred_region
          %p129 = scmp.lt.s32.totalorder %s22, 1
          %s130 = scalar_select %p129, %s22, 1
          %p131 = scmp.lt.s32.totalorder %s23, 1
          %s132 = scalar_select %p131, %s23, 1
          %s133 = smul.addr %s130, 2
          %s134 = sadd.s32 %s132, %s133
          %s135 = smul.addr %s134, 8
          %s136 = scalar_lea.vmem %s0, %s135
        $region20: #{tpu_custom_call.1} parent=15 // pred_fallthru
          _
      $region16: #{tpu_custom_call.1} parent=5 // pred_fallthru
        _
      %p137 = scmp.le.s32.totalorder 1, %s15
      %p138 = scmp.lt.s32.totalorder %s15, 5
      %p139 = pnand %p137, %p138
      %p140 = pneg %p139
      // Predicated region
      $region21: #{tpu_custom_call.1} parent=5 // pred_check
        _
      $region22: #{tpu_custom_call.1} parent=5 // pred_check_branch
        %142 = sbr.rel (%p139) target = $region24
      $region23: #{tpu_custom_call.1} parent=5 // pred_region
        %s143 = ssub.s32 %s15, 1
        %p144 = scmp.lt.s32.totalorder %s24, 1
        %s145 = scalar_select %p144, %s24, 1
        %p146 = scmp.lt.s32.totalorder %s25, 1
        %s147 = scalar_select %p146, %s25, 1
        %s148 = smul.addr %s145, 2
        %s149 = sadd.s32 %s147, %s148
        %s150 = smul.addr %s149, 8
        %s151 = scalar_lea.vmem %s0, %s150
        %p152 = pneg %p55
        %p153 = pneg %p52
        %p154 = pneg %p81
        %p155 = pneg %p78
        %s156 = sand.u32 %s68, 1
        %s157 = scalar_lea.sflag [#allocation5], %s156
        %s158 = sand.u32 %s68, 1
        %s159 = smul.addr %s158, 8
        %s160 = scalar_lea.vmem [#allocation4], %s159
        %p161 = pneg %p107
        %p162 = pneg %p104
        %s163 = sand.u32 %s94, 1
        %s164 = scalar_lea.sflag [#allocation7], %s163
        %s165 = sand.u32 %s94, 1
        %s166 = smul.addr %s165, 8
        %s167 = scalar_lea.vmem [#allocation6], %s166
        %p168 = scmp.lt.s32.totalorder %s24, 1
        %s169 = scalar_select %p168, %s24, 1
        %p170 = scmp.lt.s32.totalorder %s25, 1
        %s171 = scalar_select %p170, %s25, 1
        %s172 = smul.addr %s169, 2
        %s173 = sadd.s32 %s171, %s172
        %s174 = smul.addr %s173, 8
        %s175 = scalar_lea.vmem %s0, %s174
        %p176 = scmp.eq.s32.totalorder %s25, 0
        // Predicated region
        $region25: #{tpu_custom_call.1} parent=23 // pred_check
          %p177 = pneg %p176
        $region26: #{tpu_custom_call.1} parent=23 // pred_check_branch
          %179 = sbr.rel (%p177) target = $region28
        $region27: #{tpu_custom_call.1} parent=23 // pred_region
          %vm180 = vcmask 64512
          %181 = vst.msk [vmem:[#allocation2] sm:$0xff] %vm180, 0.0
          %182 = vst.msk [vmem:[#allocation3] sm:$0xff] %vm180, 0.0
        $region28: #{tpu_custom_call.1} parent=23 // pred_fallthru
          _
        %v183 = vld [vmem:[%s175] sm:$0xff]
        %v184 = vld [vmem:[#allocation2] sm:$0xff]
        %v185 = vadd.f32 %v183, 0.0
        %v186 = vadd.f32 %v184, %v185
        %vm187 = vcmask 64512
        %188 = vst.msk [vmem:[#allocation2] sm:$0xff] %vm187, %v186
        %v189 = vld [vmem:[#allocation3] sm:$0xff]
        %v190 = vmul.f32 %v183, %v183
        %v191 = vadd.f32 %v190, 0.0
        %v192 = vadd.f32 %v189, %v191
        %193 = vst.msk [vmem:[#allocation3] sm:$0xff] %vm187, %v192
        %p194 = scmp.eq.s32.totalorder %s25, 1
        // Predicated region
        $region29: #{tpu_custom_call.1} parent=23 // pred_check
          %p195 = pneg %p194
        $region30: #{tpu_custom_call.1} parent=23 // pred_check_branch
          %197 = sbr.rel (%p195) target = $region32
        $region31: #{tpu_custom_call.1} parent=23 // pred_region
          %v198 = vld [vmem:[#allocation2] sm:$0xff]
          %199 = vst.msk [vmem:[%s160] sm:$0xff] %vm187, %v198
          %v200 = vld [vmem:[#allocation3] sm:$0xff]
          %201 = vst.msk [vmem:[%s167] sm:$0xff] %vm187, %v200
        $region32: #{tpu_custom_call.1} parent=23 // pred_fallthru
          _
        %s202 = sand.u32 %s68, 1
        %s203 = scalar_lea.sflag [#allocation5], %s202
        %s204 = sand.u32 %s68, 1
        %s205 = smul.addr %s204, 8
        %s206 = scalar_lea.vmem [#allocation4], %s205
        %s207 = sand.u32 %s94, 1
        %s208 = scalar_lea.sflag [#allocation7], %s207
        %s209 = sand.u32 %s94, 1
        %s210 = smul.addr %s209, 8
        %s211 = scalar_lea.vmem [#allocation6], %s210
        // Predicated region
        $region33: #{tpu_custom_call.1} parent=23 // pred_check
          %p212 = pneg %p78
        $region34: #{tpu_custom_call.1} parent=23 // pred_check_branch
          %214 = sbr.rel (%p212) target = $region36
        $region35: #{tpu_custom_call.1} parent=23 // pred_region
          %216 = vsyncadd %s203, 0
          %s217 = smul.addr %s24, 8
          %s218 = scalar_lea.hbm %s1, %s217
          %s220 = sshll.u32 %s206, 4
          %s221 = int_to_ptr.vmem [resolvable:$true] %s220
          %s222 = sshll.u32 %s218, 4
          %s223 = int_to_ptr.hbm [resolvable:$true] %s222
          %225 = dma.vmem_to_hbm [thread:$0]  %s221, 128, %s223, %s203
        $region36: #{tpu_custom_call.1} parent=23 // pred_fallthru
          _
        // Predicated region
        $region37: #{tpu_custom_call.1} parent=23 // pred_check
          %p226 = pneg %p104
        $region38: #{tpu_custom_call.1} parent=23 // pred_check_branch
          %228 = sbr.rel (%p226) target = $region40
        $region39: #{tpu_custom_call.1} parent=23 // pred_region
          %230 = vsyncadd %s208, 0
          %s231 = smul.addr %s24, 8
          %s232 = scalar_lea.hbm %s2, %s231
          %s234 = sshll.u32 %s211, 4
          %s235 = int_to_ptr.vmem [resolvable:$true] %s234
          %s236 = sshll.u32 %s232, 4
          %s237 = int_to_ptr.hbm [resolvable:$true] %s236
          %239 = dma.vmem_to_hbm [thread:$0]  %s235, 128, %s237, %s208
        $region40: #{tpu_custom_call.1} parent=23 // pred_fallthru
          _
      $region24: #{tpu_custom_call.1} parent=5 // pred_fallthru
        _
      %p240 = scmp.le.s32.totalorder 2, %s15
      // Predicated region
      $region41: #{tpu_custom_call.1} parent=5 // pred_check
        %p241 = pneg %p240
      $region42: #{tpu_custom_call.1} parent=5 // pred_check_branch
        %243 = sbr.rel (%p241) target = $region44
      $region43: #{tpu_custom_call.1} parent=5 // pred_region
        %s244 = ssub.s32 %s15, 2
        // Predicated region
        $region45: #{tpu_custom_call.1} parent=43 // pred_check
          %p245 = pneg %p84
        $region46: #{tpu_custom_call.1} parent=43 // pred_check_branch
          %247 = sbr.rel (%p245) target = $region48
        $region47: #{tpu_custom_call.1} parent=43 // pred_region
          %s248 = sand.u32 %s69, 1
          %s249 = scalar_lea.sflag [#allocation5], %s248
          %s250 = sand.u32 %s69, 1
          %s251 = smul.addr %s250, 8
          %s252 = scalar_lea.vmem [#allocation4], %s251
          %254 = dma.done %s249, 128
        $region48: #{tpu_custom_call.1} parent=43 // pred_fallthru
          _
        // Predicated region
        $region49: #{tpu_custom_call.1} parent=43 // pred_check
          %p255 = pneg %p110
        $region50: #{tpu_custom_call.1} parent=43 // pred_check_branch
          %257 = sbr.rel (%p255) target = $region52
        $region51: #{tpu_custom_call.1} parent=43 // pred_region
          %s258 = sand.u32 %s95, 1
          %s259 = scalar_lea.sflag [#allocation7], %s258
          %s260 = sand.u32 %s95, 1
          %s261 = smul.addr %s260, 8
          %s262 = scalar_lea.vmem [#allocation6], %s261
          %264 = dma.done %s259, 128
        $region52: #{tpu_custom_call.1} parent=43 // pred_fallthru
          _
      $region44: #{tpu_custom_call.1} parent=5 // pred_fallthru
        _
    $region6: #{tpu_custom_call.1} parent=1 // loop_footer
      %s19 = sadd.s32 1, %s15
    $region7: #{tpu_custom_call.1} parent=1 // loop_footer_branch
      %14 = sbr.rel target = $region3
    $region8: #{tpu_custom_call.1} parent=1 // loop_exit
      _
    %265 = vsyncpa [#allocation5], 1
    %s266 = scalar_lea.sflag [#allocation5], 1
    %267 = vsyncpa %s266, 1
    %268 = vsyncpa [#allocation7], 1
    %s269 = scalar_lea.sflag [#allocation7], 1
    %270 = vsyncpa %s269, 1

</llo_original>
